<compile_context>
chip_gen: v5e
topology: v5e:2x2
jax: 0.10.0
libtpu: 0.0.40
codegen_flags: <defaults>
</compile_context>

<pallas_src>
import functools
import math

import jax
import jax.numpy as jnp
from jax import lax
from jax.experimental import pallas as pl
from jax.experimental.pallas import tpu as pltpu

# Per perf review: Precision.HIGH (bf16_3x) is enough once MXU-bound on v5e;
# HIGHEST is kept because the kernel is launch-bound here and it keeps the
# verification tolerance trivially.
_MATMUL_PRECISION = lax.Precision.HIGHEST


def _attain_kernel(cp_ref, lat_ref, drop_ref, w_ref, b_ref, o_ref, tr_ref, *,
                   pool_k, dropout_p):
    bh, w_cols = lat_ref.shape           # (block_b*H, W)
    n_rows = bh // pool_k                # block_b * Hp
    wp = w_cols // pool_k
    cw = cp_ref[0]                       # Conv2d(1,1,kernel_size=1) weight (scalar)
    cb = cp_ref[1]                       # Conv2d(1,1,kernel_size=1) bias   (scalar)

    def epilogue_rows(j):
        # Fused 1x1 conv + ReLU + inverted dropout on the j-th row of every
        # pooling window, read straight from the pipelined input block with a
        # strided sublane load (no activation scratch round-trip).
        x = lat_ref[pl.ds(j, n_rows, stride=pool_k), :] * cw + cb
        x = jnp.maximum(x, 0.0)
        if dropout_p > 0.0:
            u = drop_ref[pl.ds(j, n_rows, stride=pool_k), :]
            x = jnp.where(u >= jnp.float32(dropout_p),
                          x * jnp.float32(1.0 / (1.0 - dropout_p)),
                          jnp.float32(0.0))
        return x

    # MaxPool over rows (+ row compaction): pool_k strided reads, pool_k-1 maxes.
    r = epilogue_rows(0)
    for j in range(1, pool_k):
        r = jnp.maximum(r, epilogue_rows(j))              # (n_rows, W)

    # MaxPool over columns: put W on sublanes with one small transpose, then the
    # same strided-read trick.  The transposed layout is also exactly the RHS
    # the final matmul wants, so nothing here is wasted movement.
    tr_ref[...] = r.T                                     # (W, n_rows)
    c = tr_ref[pl.ds(0, wp, stride=pool_k), :]
    for j in range(1, pool_k):
        c = jnp.maximum(c, tr_ref[pl.ds(j, wp, stride=pool_k), :])
    # c = pooled.T : (Wp, block_b*Hp); the minor dim is a multiple of 128.

    # Linear, computed transposed so the output store is full-lane-width:
    # (input_size, Wp) @ (Wp, block_b*Hp) -> (input_size, block_b*Hp).
    out_t = jnp.dot(w_ref[...], c, preferred_element_type=jnp.float32,
                    precision=_MATMUL_PRECISION)
    o_ref[...] = out_t + b_ref[...]                       # bias column broadcast


@functools.lru_cache(maxsize=None)
def _build_call(H, W, input_size, pool_k, dropout_p, block_b, n_blocks):
    hp = H // pool_k
    wp = W // pool_k
    bh = block_b * H
    bhp = block_b * hp
    kernel = functools.partial(_attain_kernel, pool_k=pool_k,
                               dropout_p=dropout_p)
    return pl.pallas_call(
        kernel,
        grid=(n_blocks,),
        in_specs=[
            pl.BlockSpec(memory_space=pltpu.MemorySpace.SMEM),     # (2,) conv w,b
            pl.BlockSpec((bh, W), lambda i: (i, 0)),               # latent rows
            pl.BlockSpec((bh, W), lambda i: (i, 0)),               # dropout uniforms
            pl.BlockSpec((input_size, wp), lambda i: (0, 0)),      # Linear weight (resident)
            pl.BlockSpec((input_size, 1), lambda i: (0, 0)),       # Linear bias (column)
        ],
        out_specs=pl.BlockSpec((input_size, bhp), lambda i: (0, i)),
        out_shape=jax.ShapeDtypeStruct((input_size, n_blocks * bhp), jnp.float32),
        scratch_shapes=[pltpu.VMEM((W, bhp), jnp.float32)],
        compiler_params=pltpu.CompilerParams(
            dimension_semantics=("parallel",)),   # batch blocks across v7x's 2 TCs
    )


def attain_generator_forward(latent, dropout_uniform, conv_w, conv_b,
                             w_lin, b_lin, *, pool_k, dropout_p):
    """Batched ATTAINGenerator forward.

    latent, dropout_uniform: (B, H, W) uniforms in [0, 1) (the torch.rand latent
    and the dropout draw).  Returns (B, H//pool_k, input_size); the PyTorch
    module's single forward() corresponds to one row of a batch of B draws.
    """
    latent = jnp.asarray(latent, jnp.float32)
    B, H, W = latent.shape
    if H % pool_k or W % pool_k:
        raise ValueError("latent H and W must be multiples of pool_kernel_size")
    hp, wp = H // pool_k, W // pool_k
    input_size, hidden = w_lin.shape
    if hidden != wp:
        raise ValueError("Linear hidden_size must equal W // pool_kernel_size")
    if dropout_uniform is None:
        dropout_uniform = jnp.zeros((B, H, W), jnp.float32)
    dropout_uniform = jnp.asarray(dropout_uniform, jnp.float32)

    # Batch-block size: smallest count whose pooled rows fill full 128-lane
    # vregs (lane-dense matmul N + unmasked output stores) while keeping the
    # latent block sublane-aligned.
    block_b = 128 // math.gcd(hp, 128)
    while (block_b * H) % 8:
        block_b *= 2
    b_pad = -(-B // block_b) * block_b
    if b_pad != B:
        pad = ((0, b_pad - B), (0, 0), (0, 0))
        latent = jnp.pad(latent, pad)
        dropout_uniform = jnp.pad(dropout_uniform, pad)
    n_blocks = b_pad // block_b

    conv_params = jnp.stack([jnp.asarray(conv_w, jnp.float32).reshape(()),
                             jnp.asarray(conv_b, jnp.float32).reshape(())])
    call = _build_call(H, W, input_size, pool_k, float(dropout_p),
                       block_b, n_blocks)
    out_t = call(conv_params,
                 latent.reshape(b_pad * H, W),
                 dropout_uniform.reshape(b_pad * H, W),
                 jnp.asarray(w_lin, jnp.float32),
                 jnp.asarray(b_lin, jnp.float32).reshape(input_size, 1))
    # (input_size, b_pad*Hp) -> (B, Hp, input_size)
    return out_t.T.reshape(b_pad, hp, input_size)[:B]


if __name__ == "__main__":
    # config: latent_X_shape=(1,1,16,16), pool_kernel_size=2, hidden_size=8,
    #         dropout=0.1; input_size=32.  B independent generator draws are
    #         batched into one pallas_call: grid=(2,), 16 draws per block.
    H = W = 16
    K = 2
    hp, wp = H // K, W // K
    hidden = wp                     # must equal config.hidden_size
    input_size = 32
    p_drop = 0.1
    B = 32

    key = jax.random.PRNGKey(0)
    k_cw, k_cb, k_w, k_b, k_lat, k_drop = jax.random.split(key, 6)

    conv_w = jax.random.normal(k_cw, ()) * 0.5           # Conv2d(1,1,1) weight
    conv_b = jax.random.normal(k_cb, ()) * 0.1           # Conv2d(1,1,1) bias
    w_lin = jax.random.normal(k_w, (input_size, hidden), jnp.float32) / jnp.sqrt(hidden)
    b_lin = jax.random.normal(k_b, (input_size,), jnp.float32) * 0.01

    # TODO(synk): torch's RNG streams are not bit-reproducible in JAX; the
    # latent (torch.rand) and dropout draw are jax.random uniforms with the same
    # distributions, generated outside the kernel (the in-kernel hardware PRNG
    # has no interpret/CPU lowering).
    latent = jax.random.uniform(k_lat, (B, H, W), jnp.float32)
    drop_u = jax.random.uniform(k_drop, (B, H, W), jnp.float32)

    out = attain_generator_forward(latent, drop_u, conv_w, conv_b, w_lin, b_lin,
                                   pool_k=K, dropout_p=p_drop)
    out = jax.block_until_ready(out)
    assert out.shape == (B, hp, input_size), out.shape

    # Pure-JAX reference (training-mode forward of the PyTorch module).
    act = jnp.maximum(latent * conv_w + conv_b, 0.0)
    keep = (drop_u >= p_drop).astype(jnp.float32) * (1.0 / (1.0 - p_drop))
    act = act * keep
    pooled = act.reshape(B, hp, K, wp, K).max(axis=(2, 4))
    ref = jnp.einsum("bhw,ow->bho", pooled, w_lin,
                     precision=lax.Precision.HIGHEST) + b_lin

    err = float(jnp.max(jnp.abs(out - ref)))
    assert jnp.allclose(out, ref, atol=1e-4, rtol=1e-4), err
    print("KERNEL_OK")
</pallas_src>

<mosaic_0001>
module attributes {stable_mosaic.version = 11 : i64} {
  func.func @_attain_kernel(%arg0: i32, %arg1: memref<2xf32, #tpu.memory_space<smem>>, %arg2: memref<256x16xf32, #tpu.memory_space<vmem>>, %arg3: memref<256x16xf32, #tpu.memory_space<vmem>>, %arg4: memref<32x8xf32, #tpu.memory_space<vmem>>, %arg5: memref<32x1xf32, #tpu.memory_space<vmem>>, %arg6: memref<32x128xf32, #tpu.memory_space<vmem>>, %arg7: memref<16x128xf32, #tpu.memory_space<vmem>>) attributes {dimension_semantics = [#tpu.dimension_semantics<parallel>], iteration_bounds = array<i64: 2>, scalar_prefetch = 0 : i64, scratch_operands = 1 : i64, tpu.core_type = #tpu.core_type<tc>, window_params = [{transform_indices = @transform_0, window_bounds = array<i64: 2>}, {transform_indices = @transform_1, window_bounds = array<i64: 256, 16>}, {transform_indices = @transform_2, window_bounds = array<i64: 256, 16>}, {pipeline_mode = #tpu.pipeline_mode<synchronous>, transform_indices = @transform_3, window_bounds = array<i64: 32, 8>}, {pipeline_mode = #tpu.pipeline_mode<synchronous>, transform_indices = @transform_4, window_bounds = array<i64: 32, 1>}, {transform_indices = @transform_5, window_bounds = array<i64: 32, 128>}]} {
    %c0 = arith.constant 0 : index
    %0 = memref.load %arg1[%c0] : memref<2xf32, #tpu.memory_space<smem>>
    %c1 = arith.constant 1 : index
    %1 = memref.load %arg1[%c1] : memref<2xf32, #tpu.memory_space<smem>>
    %c0_0 = arith.constant 0 : index
    %c0_1 = arith.constant 0 : index
    %2 = tpu.strided_load %arg2[%c0_0, %c0_1] {strides = array<i32: 2, 1>} : memref<256x16xf32, #tpu.memory_space<vmem>>, vector<128x16xf32>
    %3 = vector.broadcast %0 : f32 to vector<128x16xf32>
    %4 = arith.mulf %2, %3 : vector<128x16xf32>
    %5 = vector.broadcast %1 : f32 to vector<128x16xf32>
    %6 = arith.addf %4, %5 : vector<128x16xf32>
    %cst = arith.constant 0.000000e+00 : f32
    %7 = vector.broadcast %cst : f32 to vector<128x16xf32>
    %8 = arith.maximumf %6, %7 : vector<128x16xf32>
    %c0_2 = arith.constant 0 : index
    %c0_3 = arith.constant 0 : index
    %9 = tpu.strided_load %arg3[%c0_2, %c0_3] {strides = array<i32: 2, 1>} : memref<256x16xf32, #tpu.memory_space<vmem>>, vector<128x16xf32>
    %cst_4 = arith.constant 1.000000e-01 : f32
    %10 = vector.broadcast %cst_4 : f32 to vector<128x16xf32>
    %11 = arith.cmpf oge, %9, %10 : vector<128x16xf32>
    %cst_5 = arith.constant 1.11111116 : f32
    %12 = vector.broadcast %cst_5 : f32 to vector<128x16xf32>
    %13 = arith.mulf %8, %12 : vector<128x16xf32>
    %cst_6 = arith.constant 0.000000e+00 : f32
    %14 = vector.broadcast %cst_6 : f32 to vector<128x16xf32>
    %15 = arith.select %11, %13, %14 : vector<128x16xi1>, vector<128x16xf32>
    %c1_7 = arith.constant 1 : index
    %c0_8 = arith.constant 0 : index
    %16 = tpu.strided_load %arg2[%c1_7, %c0_8] {strides = array<i32: 2, 1>} : memref<256x16xf32, #tpu.memory_space<vmem>>, vector<128x16xf32>
    %17 = vector.broadcast %0 : f32 to vector<128x16xf32>
    %18 = arith.mulf %16, %17 : vector<128x16xf32>
    %19 = vector.broadcast %1 : f32 to vector<128x16xf32>
    %20 = arith.addf %18, %19 : vector<128x16xf32>
    %cst_9 = arith.constant 0.000000e+00 : f32
    %21 = vector.broadcast %cst_9 : f32 to vector<128x16xf32>
    %22 = arith.maximumf %20, %21 : vector<128x16xf32>
    %c1_10 = arith.constant 1 : index
    %c0_11 = arith.constant 0 : index
    %23 = tpu.strided_load %arg3[%c1_10, %c0_11] {strides = array<i32: 2, 1>} : memref<256x16xf32, #tpu.memory_space<vmem>>, vector<128x16xf32>
    %cst_12 = arith.constant 1.000000e-01 : f32
    %24 = vector.broadcast %cst_12 : f32 to vector<128x16xf32>
    %25 = arith.cmpf oge, %23, %24 : vector<128x16xf32>
    %cst_13 = arith.constant 1.11111116 : f32
    %26 = vector.broadcast %cst_13 : f32 to vector<128x16xf32>
    %27 = arith.mulf %22, %26 : vector<128x16xf32>
    %cst_14 = arith.constant 0.000000e+00 : f32
    %28 = vector.broadcast %cst_14 : f32 to vector<128x16xf32>
    %29 = arith.select %25, %27, %28 : vector<128x16xi1>, vector<128x16xf32>
    %30 = arith.maximumf %15, %29 : vector<128x16xf32>
    %31 = tpu.transpose %30, [1, 0] : vector<128x16xf32> -> vector<16x128xf32>
    %c0_15 = arith.constant 0 : index
    %c0_16 = arith.constant 0 : index
    %32 = vector.load %arg7[%c0_15, %c0_16] : memref<16x128xf32, #tpu.memory_space<vmem>>, vector<16x128xf32>
    tpu.vector_store %arg7[%c0_15, %c0_16], %31 {strides = array<i32>} : memref<16x128xf32, #tpu.memory_space<vmem>>, vector<16x128xf32>,
    %c0_17 = arith.constant 0 : index
    %c0_18 = arith.constant 0 : index
    %33 = tpu.strided_load %arg7[%c0_17, %c0_18] {strides = array<i32: 2, 1>} : memref<16x128xf32, #tpu.memory_space<vmem>>, vector<8x128xf32>
    %c1_19 = arith.constant 1 : index
    %c0_20 = arith.constant 0 : index
    %34 = tpu.strided_load %arg7[%c1_19, %c0_20] {strides = array<i32: 2, 1>} : memref<16x128xf32, #tpu.memory_space<vmem>>, vector<8x128xf32>
    %35 = arith.maximumf %33, %34 : vector<8x128xf32>
    %c0_21 = arith.constant 0 : index
    %c0_22 = arith.constant 0 : index
    %36 = vector.load %arg4[%c0_21, %c0_22] : memref<32x8xf32, #tpu.memory_space<vmem>>, vector<32x8xf32>
    %cst_23 = arith.constant dense<0.000000e+00> : vector<32x128xf32>
    %37 = tpu.matmul %36, %35, %cst_23 {dimension_numbers = #tpu.dot_dimension_numbers<[1], [0], [0], [1], [0, 0, 1, 1], [], []>, precision = #tpu.contract_precision<fp32>} : vector<32x8xf32>, vector<8x128xf32>, vector<32x128xf32> -> vector<32x128xf32>
    %c0_24 = arith.constant 0 : index
    %c0_25 = arith.constant 0 : index
    %38 = vector.load %arg5[%c0_24, %c0_25] : memref<32x1xf32, #tpu.memory_space<vmem>>, vector<32x1xf32>
    %39 = vector.broadcast %38 : vector<32x1xf32> to vector<32x128xf32>
    %40 = arith.addf %37, %39 : vector<32x128xf32>
    %c0_26 = arith.constant 0 : index
    %c0_27 = arith.constant 0 : index
    %41 = vector.load %arg6[%c0_26, %c0_27] : memref<32x128xf32, #tpu.memory_space<vmem>>, vector<32x128xf32>
    tpu.vector_store %arg6[%c0_26, %c0_27], %40 {strides = array<i32>} : memref<32x128xf32, #tpu.memory_space<vmem>>, vector<32x128xf32>,
    return
  }
  func.func @transform_0(%arg0: i32) -> i32 {
    %c0_i32 = arith.constant 0 : i32
    %c0_i32_0 = arith.constant 0 : i32
    return %c0_i32 : i32
  }
  func.func @transform_1(%arg0: i32) -> (i32, i32) {
    %c0_i32 = arith.constant 0 : i32
    %c0_i32_0 = arith.constant 0 : i32
    return %arg0, %c0_i32 : i32, i32
  }
  func.func @transform_2(%arg0: i32) -> (i32, i32) {
    %c0_i32 = arith.constant 0 : i32
    %c0_i32_0 = arith.constant 0 : i32
    return %arg0, %c0_i32 : i32, i32
  }
  func.func @transform_3(%arg0: i32) -> (i32, i32) {
    %c0_i32 = arith.constant 0 : i32
    %c0_i32_0 = arith.constant 0 : i32
    %c0_i32_1 = arith.constant 0 : i32
    return %c0_i32, %c0_i32_0 : i32, i32
  }
  func.func @transform_4(%arg0: i32) -> (i32, i32) {
    %c0_i32 = arith.constant 0 : i32
    %c0_i32_0 = arith.constant 0 : i32
    %c0_i32_1 = arith.constant 0 : i32
    return %c0_i32, %c0_i32_0 : i32, i32
  }
  func.func @transform_5(%arg0: i32) -> (i32, i32) {
    %c0_i32 = arith.constant 0 : i32
    %c0_i32_0 = arith.constant 0 : i32
    return %c0_i32, %arg0 : i32, i32
  }
}

</mosaic_0001>

<llo_original>
// kernel: tpu_custom_call.1
$region0: #{tpu_custom_call.1}
  #allocation0 [shape = 'u32[]', space=smem, size = 0x4, offset = 0x4, fixed_abs, tag = 'smem constant byte address 0x4 - core index']
  #allocation1 [shape = 'u32[72,128]{1,0:T(1,128)}', space=vmem, size = 0x9000, scoped, tag = 'internal scratch']
  #allocation2 [shape = 'f32[16,128]{1,0:T(8,128)}', space=vmem, size = 0x2000, scoped, tag = 'scratch operand']
  %s0 = inlined_call_operand.vmem [shape: f32[2], index: 0, kind: input, shape index: {}]
  %s1 = inlined_call_operand.vmem [shape: f32[512,16], index: 1, kind: input, shape index: {}]
  %s2 = inlined_call_operand.vmem [shape: f32[512,16], index: 2, kind: input, shape index: {}]
  %s3 = inlined_call_operand.vmem [shape: f32[32,8], index: 3, kind: input, shape index: {}]
  %s4 = inlined_call_operand.vmem [shape: f32[32,1], index: 4, kind: input, shape index: {}]
  %s5 = inlined_call_operand.hbm [shape: f32[32,256], index: 5, kind: output, shape index: {}]
  %s6 = sld [smem:[#allocation0]]
  $region57: #{tpu_custom_call.1} parent=0
    _
  %s8 = ssub.s32 1, %s6
  %s9 = scalar_select 0, %s8, %s6
  $region1: #{tpu_custom_call.1} parent=0
    #allocation3 [shape = 'u8[512]{0}', space=smem, size = 0x200, scoped, tag = 'input window, operand 0, single buffered']
    #allocation4 [shape = 's32[2]{0}', space=sflag, size = 0x8, scoped, tag = 'scoped memory for tpu_custom_call.1']
    #allocation5 [shape = 's32[2]{0}', space=sflag, size = 0x8, scoped, tag = 'scoped memory for tpu_custom_call.1']
    #allocation6 [shape = 'u8[32768]{0}', space=vmem, size = 0x8000, scoped, tag = 'output window, operand 0']
    %10 = vsyncpa [#allocation5], 0
    %11 = vsyncpa [#allocation4], 0
    %s12 = scalar_lea.sflag [#allocation4], 1
    %13 = vsyncpa %s12, 0
    loop: start=0, step=1, limit=4
    $region2: #{tpu_custom_call.1} parent=1 // loop_pre_header
      _
    $region3: #{tpu_custom_call.1} parent=1 // loop_header
      %s15 = sphi 0, %s19
      %p16 = scmp.ge.s32.totalorder %s15, 4
      %s23 = sphi 0, %s23
      %s25 = sphi 0, %s23
      %s26 = sphi 0, %s25
      %s40 = sphi 0, %s26
      %s46 = sphi 0, %s48
      %s49 = sphi 0, %s46
      %s50 = sphi 0, %s49
      %s66 = sphi 0, %s50
      %s72 = sphi 0, %s74
      %s75 = sphi 0, %s72
      %s76 = sphi 0, %s75
      %s92 = sphi 0, %s76
      %s96 = sphi 0, %s96
      %s98 = sphi 0, %s96
      %s99 = sphi 0, %s98
      %s113 = sphi 0, %s99
      %s117 = sphi 0, %s117
      %s119 = sphi 0, %s117
      %s120 = sphi 0, %s119
      %s134 = sphi 0, %s120
      %s140 = sphi 0, %s142
      %s143 = sphi 0, %s140
      %s144 = sphi 0, %s143
      %s160 = sphi 0, %s144
    $region4: #{tpu_custom_call.1} parent=1 // loop_header_branch
      %18 = sbr.rel (%p16) target = $region8
    $region5: #{tpu_custom_call.1} parent=1 // loop_body
      %s20 = ssub.s32 %s15, 1
      %s21 = ssub.s32 %s15, 2
      %s22 = sadd.s32 %s15, 1
      %s24 = sadd.s32 %s23, 1
      %p27 = scmp.eq.s32.totalorder %s15, 1
      %p28 = scmp.ne.s32.totalorder %s23, %s25
      %p29 = scmp.eq.s32.totalorder %s15, 0
      %p30 = por %p28, %p29
      %p31 = scmp.ne.s32.totalorder %s23, %s25
      %p32 = scmp.eq.s32.totalorder %s20, 1
      %p33 = por %p31, %p32
      %p34 = scmp.ne.s32.totalorder %s25, %s26
      %p35 = scmp.eq.s32.totalorder %s20, 0
      %p36 = por %p34, %p35
      %p37 = scmp.ne.s32.totalorder %s25, %s26
      %p38 = scmp.eq.s32.totalorder %s21, 1
      %p39 = por %p37, %p38
      %p41 = scmp.ne.s32.totalorder %s26, %s40
      %p42 = scmp.eq.s32.totalorder %s21, 0
      %p43 = por %p41, %p42
      %s44 = ssub.s32 %s15, %s22
      %p45 = scmp.eq.s32.totalorder %s44, 0
      %s47 = sadd.s32 %s46, 1
      %s48 = scalar_select %p45, %s46, %s47
      %p51 = pneg %p45
      %p52 = scmp.eq.s32.totalorder %s15, 1
      %p53 = por %p51, %p52
      %p54 = scmp.ne.s32.totalorder %s46, %s49
      %p55 = scmp.eq.s32.totalorder %s15, 0
      %p56 = por %p54, %p55
      %p57 = scmp.ne.s32.totalorder %s46, %s49
      %p58 = scmp.eq.s32.totalorder %s20, 1
      %p59 = por %p57, %p58
      %p60 = scmp.ne.s32.totalorder %s49, %s50
      %p61 = scmp.eq.s32.totalorder %s20, 0
      %p62 = por %p60, %p61
      %p63 = scmp.ne.s32.totalorder %s49, %s50
      %p64 = scmp.eq.s32.totalorder %s21, 1
      %p65 = por %p63, %p64
      %p67 = scmp.ne.s32.totalorder %s50, %s66
      %p68 = scmp.eq.s32.totalorder %s21, 0
      %p69 = por %p67, %p68
      %s70 = ssub.s32 %s15, %s22
      %p71 = scmp.eq.s32.totalorder %s70, 0
      %s73 = sadd.s32 %s72, 1
      %s74 = scalar_select %p71, %s72, %s73
      %p77 = pneg %p71
      %p78 = scmp.eq.s32.totalorder %s15, 1
      %p79 = por %p77, %p78
      %p80 = scmp.ne.s32.totalorder %s72, %s75
      %p81 = scmp.eq.s32.totalorder %s15, 0
      %p82 = por %p80, %p81
      %p83 = scmp.ne.s32.totalorder %s72, %s75
      %p84 = scmp.eq.s32.totalorder %s20, 1
      %p85 = por %p83, %p84
      %p86 = scmp.ne.s32.totalorder %s75, %s76
      %p87 = scmp.eq.s32.totalorder %s20, 0
      %p88 = por %p86, %p87
      %p89 = scmp.ne.s32.totalorder %s75, %s76
      %p90 = scmp.eq.s32.totalorder %s21, 1
      %p91 = por %p89, %p90
      %p93 = scmp.ne.s32.totalorder %s76, %s92
      %p94 = scmp.eq.s32.totalorder %s21, 0
      %p95 = por %p93, %p94
      %s97 = sadd.s32 %s96, 1
      %p100 = scmp.eq.s32.totalorder %s15, 1
      %p101 = scmp.ne.s32.totalorder %s96, %s98
      %p102 = scmp.eq.s32.totalorder %s15, 0
      %p103 = por %p101, %p102
      %p104 = scmp.ne.s32.totalorder %s96, %s98
      %p105 = scmp.eq.s32.totalorder %s20, 1
      %p106 = por %p104, %p105
      %p107 = scmp.ne.s32.totalorder %s98, %s99
      %p108 = scmp.eq.s32.totalorder %s20, 0
      %p109 = por %p107, %p108
      %p110 = scmp.ne.s32.totalorder %s98, %s99
      %p111 = scmp.eq.s32.totalorder %s21, 1
      %p112 = por %p110, %p111
      %p114 = scmp.ne.s32.totalorder %s99, %s113
      %p115 = scmp.eq.s32.totalorder %s21, 0
      %p116 = por %p114, %p115
      %s118 = sadd.s32 %s117, 1
      %p121 = scmp.eq.s32.totalorder %s15, 1
      %p122 = scmp.ne.s32.totalorder %s117, %s119
      %p123 = scmp.eq.s32.totalorder %s15, 0
      %p124 = por %p122, %p123
      %p125 = scmp.ne.s32.totalorder %s117, %s119
      %p126 = scmp.eq.s32.totalorder %s20, 1
      %p127 = por %p125, %p126
      %p128 = scmp.ne.s32.totalorder %s119, %s120
      %p129 = scmp.eq.s32.totalorder %s20, 0
      %p130 = por %p128, %p129
      %p131 = scmp.ne.s32.totalorder %s119, %s120
      %p132 = scmp.eq.s32.totalorder %s21, 1
      %p133 = por %p131, %p132
      %p135 = scmp.ne.s32.totalorder %s120, %s134
      %p136 = scmp.eq.s32.totalorder %s21, 0
      %p137 = por %p135, %p136
      %s138 = ssub.s32 %s15, %s22
      %p139 = scmp.eq.s32.totalorder %s138, 0
      %s141 = sadd.s32 %s140, 1
      %s142 = scalar_select %p139, %s140, %s141
      %p145 = pneg %p139
      %p146 = scmp.eq.s32.totalorder %s15, 1
      %p147 = por %p145, %p146
      %p148 = scmp.ne.s32.totalorder %s140, %s143
      %p149 = scmp.eq.s32.totalorder %s15, 0
      %p150 = por %p148, %p149
      %p151 = scmp.ne.s32.totalorder %s140, %s143
      %p152 = scmp.eq.s32.totalorder %s20, 1
      %p153 = por %p151, %p152
      %p154 = scmp.ne.s32.totalorder %s143, %s144
      %p155 = scmp.eq.s32.totalorder %s20, 0
      %p156 = por %p154, %p155
      %p157 = scmp.ne.s32.totalorder %s143, %s144
      %p158 = scmp.eq.s32.totalorder %s21, 1
      %p159 = por %p157, %p158
      %p161 = scmp.ne.s32.totalorder %s144, %s160
      %p162 = scmp.eq.s32.totalorder %s21, 0
      %p163 = por %p161, %p162
      %p164 = scmp.le.s32.totalorder 1, %s15
      %p165 = scmp.lt.s32.totalorder %s15, 3
      %p166 = pnand %p164, %p165
      %p167 = pneg %p166
      // Predicated region
      $region9: #{tpu_custom_call.1} parent=5 // pred_check
        _
      $region10: #{tpu_custom_call.1} parent=5 // pred_check_branch
        %169 = sbr.rel (%p166) target = $region12
      $region11: #{tpu_custom_call.1} parent=5 // pred_region
        %s170 = ssub.s32 %s15, 1
        // Predicated region
        $region13: #{tpu_custom_call.1} parent=11 // pred_check
          %p171 = pneg %p36
        $region14: #{tpu_custom_call.1} parent=11 // pred_check_branch
          %173 = sbr.rel (%p171) target = $region16
        $region15: #{tpu_custom_call.1} parent=11 // pred_region
          %175 = vsyncadd [#allocation5], 0
          %s177 = sshll.u32 %s0, 4
          %s178 = int_to_ptr.vmem [resolvable:$true] %s177
          %180 = dma.vmem_to_smem %s178, 16, [#allocation3], [#allocation5]
        $region16: #{tpu_custom_call.1} parent=11 // pred_fallthru
          _
        // Predicated region
        $region17: #{tpu_custom_call.1} parent=11 // pred_check
          %p181 = pneg %p109
        $region18: #{tpu_custom_call.1} parent=11 // pred_check_branch
          %183 = sbr.rel (%p181) target = $region20
        $region19: #{tpu_custom_call.1} parent=11 // pred_region
          _
        $region20: #{tpu_custom_call.1} parent=11 // pred_fallthru
          _
        // Predicated region
        $region21: #{tpu_custom_call.1} parent=11 // pred_check
          %p184 = pneg %p130
        $region22: #{tpu_custom_call.1} parent=11 // pred_check_branch
          %186 = sbr.rel (%p184) target = $region24
        $region23: #{tpu_custom_call.1} parent=11 // pred_region
          _
        $region24: #{tpu_custom_call.1} parent=11 // pred_fallthru
          _
      $region12: #{tpu_custom_call.1} parent=5 // pred_fallthru
        _
      %p187 = scmp.lt.s32.totalorder %s15, 2
      // Predicated region
      $region25: #{tpu_custom_call.1} parent=5 // pred_check
        %p188 = pneg %p187
      $region26: #{tpu_custom_call.1} parent=5 // pred_check_branch
        %190 = sbr.rel (%p188) target = $region28
      $region27: #{tpu_custom_call.1} parent=5 // pred_region
        // Predicated region
        $region29: #{tpu_custom_call.1} parent=27 // pred_check
          %p191 = pneg %p56
        $region30: #{tpu_custom_call.1} parent=27 // pred_check_branch
          %193 = sbr.rel (%p191) target = $region32
        $region31: #{tpu_custom_call.1} parent=27 // pred_region
          %s194 = smul.u32 32, %s15
          %p195 = scmp.lt.s32.totalorder %s194, 63
          %s196 = scalar_select %p195, %s194, 63
          %s197 = smul.addr %s196, 8
          %s198 = scalar_lea.vmem %s1, %s197
          %s199 = smul.u32 32, %s15
        $region32: #{tpu_custom_call.1} parent=27 // pred_fallthru
          _
        // Predicated region
        $region33: #{tpu_custom_call.1} parent=27 // pred_check
          %p200 = pneg %p82
        $region34: #{tpu_custom_call.1} parent=27 // pred_check_branch
          %202 = sbr.rel (%p200) target = $region36
        $region35: #{tpu_custom_call.1} parent=27 // pred_region
          %s203 = smul.u32 32, %s15
          %p204 = scmp.lt.s32.totalorder %s203, 63
          %s205 = scalar_select %p204, %s203, 63
          %s206 = smul.addr %s205, 8
          %s207 = scalar_lea.vmem %s2, %s206
          %s208 = smul.u32 32, %s15
        $region36: #{tpu_custom_call.1} parent=27 // pred_fallthru
          _
      $region28: #{tpu_custom_call.1} parent=5 // pred_fallthru
        _
      %p209 = scmp.le.s32.totalorder 1, %s15
      %p210 = scmp.lt.s32.totalorder %s15, 3
      %p211 = pnand %p209, %p210
      %p212 = pneg %p211
      // Predicated region
      $region37: #{tpu_custom_call.1} parent=5 // pred_check
        _
      $region38: #{tpu_custom_call.1} parent=5 // pred_check_branch
        %214 = sbr.rel (%p211) target = $region40
      $region39: #{tpu_custom_call.1} parent=5 // pred_region
        %s215 = ssub.s32 %s15, 1
        // Predicated region
        $region41: #{tpu_custom_call.1} parent=39 // pred_check
          %p216 = pneg %p36
        $region42: #{tpu_custom_call.1} parent=39 // pred_check_branch
          %218 = sbr.rel (%p216) target = $region44
        $region43: #{tpu_custom_call.1} parent=39 // pred_region
          %220 = dma.done [#allocation5], 16
        $region44: #{tpu_custom_call.1} parent=39 // pred_fallthru
          _
        %221 = sfence
        %p222 = pneg %p36
        %p223 = pneg %p33
        %s224 = smul.u32 32, %s20
        %p225 = scmp.lt.s32.totalorder %s224, 63
        %s226 = scalar_select %p225, %s224, 63
        %s227 = smul.addr %s226, 8
        %s228 = scalar_lea.vmem %s1, %s227
        %p229 = pneg %p62
        %p230 = pneg %p59
        %s231 = smul.u32 32, %s20
        %p232 = scmp.lt.s32.totalorder %s231, 63
        %s233 = scalar_select %p232, %s231, 63
        %s234 = smul.addr %s233, 8
        %s235 = scalar_lea.vmem %s2, %s234
        %p236 = pneg %p88
        %p237 = pneg %p85
        %p238 = pneg %p109
        %p239 = pneg %p106
        %p240 = pneg %p130
        %p241 = pneg %p127
        %p242 = pneg %p156
        %p243 = pneg %p153
        %s244 = sand.u32 %s143, 1
        %s245 = scalar_lea.sflag [#allocation4], %s244
        %s246 = sand.u32 %s143, 1
        %s247 = smul.addr %s246, 32
        %s248 = scalar_lea.vmem [#allocation6], %s247
        %s249 = smul.u32 32, %s20
        %p250 = scmp.lt.s32.totalorder %s249, 63
        %s251 = scalar_select %p250, %s249, 63
        %s252 = smul.addr %s251, 8
        %s253 = scalar_lea.vmem %s1, %s252
        %s254 = smul.u32 32, %s20
        %s255 = smul.u32 32, %s20
        %p256 = scmp.lt.s32.totalorder %s255, 63
        %s257 = scalar_select %p256, %s255, 63
        %s258 = smul.addr %s257, 8
        %s259 = scalar_lea.vmem %s2, %s258
        %s260 = smul.u32 32, %s20
        %s261 = sld [smem:[#allocation3]]
        %s262 = sld [smem:[#allocation3 + $0x1]]
        %v263 = vld [vmem:[%s253] ss:$2 sm:$0xff]
        %s264 = scalar_lea.vmem %s253, 16
        %v265 = vld [vmem:[%s264] ss:$2 sm:$0xff]
        %s266 = scalar_lea.vmem %s253, 32
        %v267 = vld [vmem:[%s266] ss:$2 sm:$0xff]
        %s268 = scalar_lea.vmem %s253, 48
        %v269 = vld [vmem:[%s268] ss:$2 sm:$0xff]
        %s270 = scalar_lea.vmem %s253, 64
        %v271 = vld [vmem:[%s270] ss:$2 sm:$0xff]
        %s272 = scalar_lea.vmem %s253, 80
        %v273 = vld [vmem:[%s272] ss:$2 sm:$0xff]
        %s274 = scalar_lea.vmem %s253, 96
        %v275 = vld [vmem:[%s274] ss:$2 sm:$0xff]
        %s276 = scalar_lea.vmem %s253, 112
        %v277 = vld [vmem:[%s276] ss:$2 sm:$0xff]
        %s278 = scalar_lea.vmem %s253, 128
        %v279 = vld [vmem:[%s278] ss:$2 sm:$0xff]
        %s280 = scalar_lea.vmem %s253, 144
        %v281 = vld [vmem:[%s280] ss:$2 sm:$0xff]
        %s282 = scalar_lea.vmem %s253, 160
        %v283 = vld [vmem:[%s282] ss:$2 sm:$0xff]
        %s284 = scalar_lea.vmem %s253, 176
        %v285 = vld [vmem:[%s284] ss:$2 sm:$0xff]
        %s286 = scalar_lea.vmem %s253, 192
        %v287 = vld [vmem:[%s286] ss:$2 sm:$0xff]
        %s288 = scalar_lea.vmem %s253, 208
        %v289 = vld [vmem:[%s288] ss:$2 sm:$0xff]
        %s290 = scalar_lea.vmem %s253, 224
        %v291 = vld [vmem:[%s290] ss:$2 sm:$0xff]
        %s292 = scalar_lea.vmem %s253, 240
        %v293 = vld [vmem:[%s292] ss:$2 sm:$0xff]
        %v294 = vstv %s261
        %v295 = vmul.f32 %v263, %v294
        %v296 = vmul.f32 %v265, %v294
        %v297 = vmul.f32 %v267, %v294
        %v298 = vmul.f32 %v269, %v294
        %v299 = vmul.f32 %v271, %v294
        %v300 = vmul.f32 %v273, %v294
        %v301 = vmul.f32 %v275, %v294
        %v302 = vmul.f32 %v277, %v294
        %v303 = vmul.f32 %v279, %v294
        %v304 = vmul.f32 %v281, %v294
        %v305 = vmul.f32 %v283, %v294
        %v306 = vmul.f32 %v285, %v294
        %v307 = vmul.f32 %v287, %v294
        %v308 = vmul.f32 %v289, %v294
        %v309 = vmul.f32 %v291, %v294
        %v310 = vmul.f32 %v293, %v294
        %v311 = vstv %s262
        %v312 = vadd.f32 %v295, %v311
        %v313 = vadd.f32 %v296, %v311
        %v314 = vadd.f32 %v297, %v311
        %v315 = vadd.f32 %v298, %v311
        %v316 = vadd.f32 %v299, %v311
        %v317 = vadd.f32 %v300, %v311
        %v318 = vadd.f32 %v301, %v311
        %v319 = vadd.f32 %v302, %v311
        %v320 = vadd.f32 %v303, %v311
        %v321 = vadd.f32 %v304, %v311
        %v322 = vadd.f32 %v305, %v311
        %v323 = vadd.f32 %v306, %v311
        %v324 = vadd.f32 %v307, %v311
        %v325 = vadd.f32 %v308, %v311
        %v326 = vadd.f32 %v309, %v311
        %v327 = vadd.f32 %v310, %v311
        %v328 = vmax.f32 %v312, 0.0
        %v329 = vmax.f32 %v313, 0.0
        %v330 = vmax.f32 %v314, 0.0
        %v331 = vmax.f32 %v315, 0.0
        %v332 = vmax.f32 %v316, 0.0
        %v333 = vmax.f32 %v317, 0.0
        %v334 = vmax.f32 %v318, 0.0
        %v335 = vmax.f32 %v319, 0.0
        %v336 = vmax.f32 %v320, 0.0
        %v337 = vmax.f32 %v321, 0.0
        %v338 = vmax.f32 %v322, 0.0
        %v339 = vmax.f32 %v323, 0.0
        %v340 = vmax.f32 %v324, 0.0
        %v341 = vmax.f32 %v325, 0.0
        %v342 = vmax.f32 %v326, 0.0
        %v343 = vmax.f32 %v327, 0.0
        %v344 = vld [vmem:[%s259] ss:$2 sm:$0xff]
        %s345 = scalar_lea.vmem %s259, 16
        %v346 = vld [vmem:[%s345] ss:$2 sm:$0xff]
        %s347 = scalar_lea.vmem %s259, 32
        %v348 = vld [vmem:[%s347] ss:$2 sm:$0xff]
        %s349 = scalar_lea.vmem %s259, 48
        %v350 = vld [vmem:[%s349] ss:$2 sm:$0xff]
        %s351 = scalar_lea.vmem %s259, 64
        %v352 = vld [vmem:[%s351] ss:$2 sm:$0xff]
        %s353 = scalar_lea.vmem %s259, 80
        %v354 = vld [vmem:[%s353] ss:$2 sm:$0xff]
        %s355 = scalar_lea.vmem %s259, 96
        %v356 = vld [vmem:[%s355] ss:$2 sm:$0xff]
        %s357 = scalar_lea.vmem %s259, 112
        %v358 = vld [vmem:[%s357] ss:$2 sm:$0xff]
        %s359 = scalar_lea.vmem %s259, 128
        %v360 = vld [vmem:[%s359] ss:$2 sm:$0xff]
        %s361 = scalar_lea.vmem %s259, 144
        %v362 = vld [vmem:[%s361] ss:$2 sm:$0xff]
        %s363 = scalar_lea.vmem %s259, 160
        %v364 = vld [vmem:[%s363] ss:$2 sm:$0xff]
        %s365 = scalar_lea.vmem %s259, 176
        %v366 = vld [vmem:[%s365] ss:$2 sm:$0xff]
        %s367 = scalar_lea.vmem %s259, 192
        %v368 = vld [vmem:[%s367] ss:$2 sm:$0xff]
        %s369 = scalar_lea.vmem %s259, 208
        %v370 = vld [vmem:[%s369] ss:$2 sm:$0xff]
        %s371 = scalar_lea.vmem %s259, 224
        %v372 = vld [vmem:[%s371] ss:$2 sm:$0xff]
        %s373 = scalar_lea.vmem %s259, 240
        %v374 = vld [vmem:[%s373] ss:$2 sm:$0xff]
        %vm375 = vcmp.ge.f32.partialorder %v344, 0.1
        %vm376 = vcmp.ge.f32.partialorder %v346, 0.1
        %vm377 = vcmp.ge.f32.partialorder %v348, 0.1
        %vm378 = vcmp.ge.f32.partialorder %v350, 0.1
        %vm379 = vcmp.ge.f32.partialorder %v352, 0.1
        %vm380 = vcmp.ge.f32.partialorder %v354, 0.1
        %vm381 = vcmp.ge.f32.partialorder %v356, 0.1
        %vm382 = vcmp.ge.f32.partialorder %v358, 0.1
        %vm383 = vcmp.ge.f32.partialorder %v360, 0.1
        %vm384 = vcmp.ge.f32.partialorder %v362, 0.1
        %vm385 = vcmp.ge.f32.partialorder %v364, 0.1
        %vm386 = vcmp.ge.f32.partialorder %v366, 0.1
        %vm387 = vcmp.ge.f32.partialorder %v368, 0.1
        %vm388 = vcmp.ge.f32.partialorder %v370, 0.1
        %vm389 = vcmp.ge.f32.partialorder %v372, 0.1
        %vm390 = vcmp.ge.f32.partialorder %v374, 0.1
        %v391 = vmul.f32 %v328, 1.1111112
        %v392 = vmul.f32 %v329, 1.1111112
        %v393 = vmul.f32 %v330, 1.1111112
        %v394 = vmul.f32 %v331, 1.1111112
        %v395 = vmul.f32 %v332, 1.1111112
        %v396 = vmul.f32 %v333, 1.1111112
        %v397 = vmul.f32 %v334, 1.1111112
        %v398 = vmul.f32 %v335, 1.1111112
        %v399 = vmul.f32 %v336, 1.1111112
        %v400 = vmul.f32 %v337, 1.1111112
        %v401 = vmul.f32 %v338, 1.1111112
        %v402 = vmul.f32 %v339, 1.1111112
        %v403 = vmul.f32 %v340, 1.1111112
        %v404 = vmul.f32 %v341, 1.1111112
        %v405 = vmul.f32 %v342, 1.1111112
        %v406 = vmul.f32 %v343, 1.1111112
        %v407 = vsel %vm375, %v391, 0.0
        %v408 = vsel %vm376, %v392, 0.0
        %v409 = vsel %vm377, %v393, 0.0
        %v410 = vsel %vm378, %v394, 0.0
        %v411 = vsel %vm379, %v395, 0.0
        %v412 = vsel %vm380, %v396, 0.0
        %v413 = vsel %vm381, %v397, 0.0
        %v414 = vsel %vm382, %v398, 0.0
        %v415 = vsel %vm383, %v399, 0.0
        %v416 = vsel %vm384, %v400, 0.0
        %v417 = vsel %vm385, %v401, 0.0
        %v418 = vsel %vm386, %v402, 0.0
        %v419 = vsel %vm387, %v403, 0.0
        %v420 = vsel %vm388, %v404, 0.0
        %v421 = vsel %vm389, %v405, 0.0
        %v422 = vsel %vm390, %v406, 0.0
        %s423 = scalar_lea.vmem %s253, 1
        %v424 = vld [vmem:[%s423] ss:$2 sm:$0xff]
        %s425 = scalar_lea.vmem %s253, 17
        %v426 = vld [vmem:[%s425] ss:$2 sm:$0xff]
        %s427 = scalar_lea.vmem %s253, 33
        %v428 = vld [vmem:[%s427] ss:$2 sm:$0xff]
        %s429 = scalar_lea.vmem %s253, 49
        %v430 = vld [vmem:[%s429] ss:$2 sm:$0xff]
        %s431 = scalar_lea.vmem %s253, 65
        %v432 = vld [vmem:[%s431] ss:$2 sm:$0xff]
        %s433 = scalar_lea.vmem %s253, 81
        %v434 = vld [vmem:[%s433] ss:$2 sm:$0xff]
        %s435 = scalar_lea.vmem %s253, 97
        %v436 = vld [vmem:[%s435] ss:$2 sm:$0xff]
        %s437 = scalar_lea.vmem %s253, 113
        %v438 = vld [vmem:[%s437] ss:$2 sm:$0xff]
        %s439 = scalar_lea.vmem %s253, 129
        %v440 = vld [vmem:[%s439] ss:$2 sm:$0xff]
        %s441 = scalar_lea.vmem %s253, 145
        %v442 = vld [vmem:[%s441] ss:$2 sm:$0xff]
        %s443 = scalar_lea.vmem %s253, 161
        %v444 = vld [vmem:[%s443] ss:$2 sm:$0xff]
        %s445 = scalar_lea.vmem %s253, 177
        %v446 = vld [vmem:[%s445] ss:$2 sm:$0xff]
        %s447 = scalar_lea.vmem %s253, 193
        %v448 = vld [vmem:[%s447] ss:$2 sm:$0xff]
        %s449 = scalar_lea.vmem %s253, 209
        %v450 = vld [vmem:[%s449] ss:$2 sm:$0xff]
        %s451 = scalar_lea.vmem %s253, 225
        %v452 = vld [vmem:[%s451] ss:$2 sm:$0xff]
        %s453 = scalar_lea.vmem %s253, 241
        %v454 = vld [vmem:[%s453] ss:$2 sm:$0xff]
        %v455 = vmul.f32 %v424, %v294
        %v456 = vmul.f32 %v426, %v294
        %v457 = vmul.f32 %v428, %v294
        %v458 = vmul.f32 %v430, %v294
        %v459 = vmul.f32 %v432, %v294
        %v460 = vmul.f32 %v434, %v294
        %v461 = vmul.f32 %v436, %v294
        %v462 = vmul.f32 %v438, %v294
        %v463 = vmul.f32 %v440, %v294
        %v464 = vmul.f32 %v442, %v294
        %v465 = vmul.f32 %v444, %v294
        %v466 = vmul.f32 %v446, %v294
        %v467 = vmul.f32 %v448, %v294
        %v468 = vmul.f32 %v450, %v294
        %v469 = vmul.f32 %v452, %v294
        %v470 = vmul.f32 %v454, %v294
        %v471 = vadd.f32 %v455, %v311
        %v472 = vadd.f32 %v456, %v311
        %v473 = vadd.f32 %v457, %v311
        %v474 = vadd.f32 %v458, %v311
        %v475 = vadd.f32 %v459, %v311
        %v476 = vadd.f32 %v460, %v311
        %v477 = vadd.f32 %v461, %v311
        %v478 = vadd.f32 %v462, %v311
        %v479 = vadd.f32 %v463, %v311
        %v480 = vadd.f32 %v464, %v311
        %v481 = vadd.f32 %v465, %v311
        %v482 = vadd.f32 %v466, %v311
        %v483 = vadd.f32 %v467, %v311
        %v484 = vadd.f32 %v468, %v311
        %v485 = vadd.f32 %v469, %v311
        %v486 = vadd.f32 %v470, %v311
        %v487 = vmax.f32 %v471, 0.0
        %v488 = vmax.f32 %v472, 0.0
        %v489 = vmax.f32 %v473, 0.0
        %v490 = vmax.f32 %v474, 0.0
        %v491 = vmax.f32 %v475, 0.0
        %v492 = vmax.f32 %v476, 0.0
        %v493 = vmax.f32 %v477, 0.0
        %v494 = vmax.f32 %v478, 0.0
        %v495 = vmax.f32 %v479, 0.0
        %v496 = vmax.f32 %v480, 0.0
        %v497 = vmax.f32 %v481, 0.0
        %v498 = vmax.f32 %v482, 0.0
        %v499 = vmax.f32 %v483, 0.0
        %v500 = vmax.f32 %v484, 0.0
        %v501 = vmax.f32 %v485, 0.0
        %v502 = vmax.f32 %v486, 0.0
        %s503 = scalar_lea.vmem %s259, 1
        %v504 = vld [vmem:[%s503] ss:$2 sm:$0xff]
        %s505 = scalar_lea.vmem %s259, 17
        %v506 = vld [vmem:[%s505] ss:$2 sm:$0xff]
        %s507 = scalar_lea.vmem %s259, 33
        %v508 = vld [vmem:[%s507] ss:$2 sm:$0xff]
        %s509 = scalar_lea.vmem %s259, 49
        %v510 = vld [vmem:[%s509] ss:$2 sm:$0xff]
        %s511 = scalar_lea.vmem %s259, 65
        %v512 = vld [vmem:[%s511] ss:$2 sm:$0xff]
        %s513 = scalar_lea.vmem %s259, 81
        %v514 = vld [vmem:[%s513] ss:$2 sm:$0xff]
        %s515 = scalar_lea.vmem %s259, 97
        %v516 = vld [vmem:[%s515] ss:$2 sm:$0xff]
        %s517 = scalar_lea.vmem %s259, 113
        %v518 = vld [vmem:[%s517] ss:$2 sm:$0xff]
        %s519 = scalar_lea.vmem %s259, 129
        %v520 = vld [vmem:[%s519] ss:$2 sm:$0xff]
        %s521 = scalar_lea.vmem %s259, 145
        %v522 = vld [vmem:[%s521] ss:$2 sm:$0xff]
        %s523 = scalar_lea.vmem %s259, 161
        %v524 = vld [vmem:[%s523] ss:$2 sm:$0xff]
        %s525 = scalar_lea.vmem %s259, 177
        %v526 = vld [vmem:[%s525] ss:$2 sm:$0xff]
        %s527 = scalar_lea.vmem %s259, 193
        %v528 = vld [vmem:[%s527] ss:$2 sm:$0xff]
        %s529 = scalar_lea.vmem %s259, 209
        %v530 = vld [vmem:[%s529] ss:$2 sm:$0xff]
        %s531 = scalar_lea.vmem %s259, 225
        %v532 = vld [vmem:[%s531] ss:$2 sm:$0xff]
        %s533 = scalar_lea.vmem %s259, 241
        %v534 = vld [vmem:[%s533] ss:$2 sm:$0xff]
        %vm535 = vcmp.ge.f32.partialorder %v504, 0.1
        %vm536 = vcmp.ge.f32.partialorder %v506, 0.1
        %vm537 = vcmp.ge.f32.partialorder %v508, 0.1
        %vm538 = vcmp.ge.f32.partialorder %v510, 0.1
        %vm539 = vcmp.ge.f32.partialorder %v512, 0.1
        %vm540 = vcmp.ge.f32.partialorder %v514, 0.1
        %vm541 = vcmp.ge.f32.partialorder %v516, 0.1
        %vm542 = vcmp.ge.f32.partialorder %v518, 0.1
        %vm543 = vcmp.ge.f32.partialorder %v520, 0.1
        %vm544 = vcmp.ge.f32.partialorder %v522, 0.1
        %vm545 = vcmp.ge.f32.partialorder %v524, 0.1
        %vm546 = vcmp.ge.f32.partialorder %v526, 0.1
        %vm547 = vcmp.ge.f32.partialorder %v528, 0.1
        %vm548 = vcmp.ge.f32.partialorder %v530, 0.1
        %vm549 = vcmp.ge.f32.partialorder %v532, 0.1
        %vm550 = vcmp.ge.f32.partialorder %v534, 0.1
        %v551 = vmul.f32 %v487, 1.1111112
        %v552 = vmul.f32 %v488, 1.1111112
        %v553 = vmul.f32 %v489, 1.1111112
        %v554 = vmul.f32 %v490, 1.1111112
        %v555 = vmul.f32 %v491, 1.1111112
        %v556 = vmul.f32 %v492, 1.1111112
        %v557 = vmul.f32 %v493, 1.1111112
        %v558 = vmul.f32 %v494, 1.1111112
        %v559 = vmul.f32 %v495, 1.1111112
        %v560 = vmul.f32 %v496, 1.1111112
        %v561 = vmul.f32 %v497, 1.1111112
        %v562 = vmul.f32 %v498, 1.1111112
        %v563 = vmul.f32 %v499, 1.1111112
        %v564 = vmul.f32 %v500, 1.1111112
        %v565 = vmul.f32 %v501, 1.1111112
        %v566 = vmul.f32 %v502, 1.1111112
        %v567 = vsel %vm535, %v551, 0.0
        %v568 = vsel %vm536, %v552, 0.0
        %v569 = vsel %vm537, %v553, 0.0
        %v570 = vsel %vm538, %v554, 0.0
        %v571 = vsel %vm539, %v555, 0.0
        %v572 = vsel %vm540, %v556, 0.0
        %v573 = vsel %vm541, %v557, 0.0
        %v574 = vsel %vm542, %v558, 0.0
        %v575 = vsel %vm543, %v559, 0.0
        %v576 = vsel %vm544, %v560, 0.0
        %v577 = vsel %vm545, %v561, 0.0
        %v578 = vsel %vm546, %v562, 0.0
        %v579 = vsel %vm547, %v563, 0.0
        %v580 = vsel %vm548, %v564, 0.0
        %v581 = vsel %vm549, %v565, 0.0
        %v582 = vsel %vm550, %v566, 0.0
        %v583 = vmax.f32 %v407, %v567
        %v584 = vmax.f32 %v408, %v568
        %v585 = vmax.f32 %v409, %v569
        %v586 = vmax.f32 %v410, %v570
        %v587 = vmax.f32 %v411, %v571
        %v588 = vmax.f32 %v412, %v572
        %v589 = vmax.f32 %v413, %v573
        %v590 = vmax.f32 %v414, %v574
        %v591 = vmax.f32 %v415, %v575
        %v592 = vmax.f32 %v416, %v576
        %v593 = vmax.f32 %v417, %v577
        %v594 = vmax.f32 %v418, %v578
        %v595 = vmax.f32 %v419, %v579
        %v596 = vmax.f32 %v420, %v580
        %v597 = vmax.f32 %v421, %v581
        %v598 = vmax.f32 %v422, %v582
        %599 = vxpose.xlu0.b32.start [1/16] %v583, 128
        %600 = vxpose.xlu0.b32.cont [2/16] %v584, 128
        %601 = vxpose.xlu0.b32.cont [3/16] %v585, 128
        %602 = vxpose.xlu0.b32.cont [4/16] %v586, 128
        %603 = vxpose.xlu0.b32.cont [5/16] %v587, 128
        %604 = vxpose.xlu0.b32.cont [6/16] %v588, 128
        %605 = vxpose.xlu0.b32.cont [7/16] %v589, 128
        %606 = vxpose.xlu0.b32.cont [8/16] %v590, 128
        %607 = vxpose.xlu0.b32.cont [9/16] %v591, 128
        %608 = vxpose.xlu0.b32.cont [10/16] %v592, 128
        %609 = vxpose.xlu0.b32.cont [11/16] %v593, 128
        %610 = vxpose.xlu0.b32.cont [12/16] %v594, 128
        %611 = vxpose.xlu0.b32.cont [13/16] %v595, 128
        %612 = vxpose.xlu0.b32.cont [14/16] %v596, 128
        %613 = vxpose.xlu0.b32.cont [15/16] %v597, 128
        %614 = vxpose.xlu0.b32.end [16/16] %v598, 128
        %v615 = vpop.trf.xlu0
        %v616 = vpop.trf.xlu0
        %v617 = vpop.trf.xlu0
        %v618 = vpop.trf.xlu0
        %v619 = vpop.trf.xlu0
        %v620 = vpop.trf.xlu0
        %v621 = vpop.trf.xlu0
        %v622 = vpop.trf.xlu0
        %v623 = vpop.trf.xlu0
        %v624 = vpop.trf.xlu0
        %v625 = vpop.trf.xlu0
        %v626 = vpop.trf.xlu0
        %v627 = vpop.trf.xlu0
        %v628 = vpop.trf.xlu0
        %v629 = vpop.trf.xlu0
        %v630 = vpop.trf.xlu0
        %631 = vst [vmem:[#allocation2] sm:$0xff] %v615
        %632 = vst [vmem:[#allocation2 + $0x8] sm:$0xff] %v616
        %v633 = vld [vmem:[#allocation2] ss:$2 sm:$0xff]
        %s634 = scalar_lea.vmem [#allocation2], 1
        %v635 = vld [vmem:[%s634] ss:$2 sm:$0xff]
        %v636 = vmax.f32 %v633, %v635
        %v637 = vld [vmem:[%s3] sm:$0xff]
        %v638 = vld [vmem:[%s3 + $0x8] sm:$0xff]
        %v639 = vld [vmem:[%s3 + $0x10] sm:$0xff]
        %v640 = vld [vmem:[%s3 + $0x18] sm:$0xff]
        %v641 = vld [vmem:[%s4] sm:$0xff]
        %v642 = vld [vmem:[%s4 + $0x8] sm:$0xff]
        %v643 = vld [vmem:[%s4 + $0x10] sm:$0xff]
        %v644 = vld [vmem:[%s4 + $0x18] sm:$0xff]
        %646 = vset.pattern.permute.xlu0 0
        %647 = vperm.xlu0 %646, %v641
        %v648 = vpop.permute.xlu0 %647
        %651 = vset.pattern.permute.xlu0 0
        %652 = vperm.xlu0 %651, %v642
        %v653 = vpop.permute.xlu0 %652
        %656 = vset.pattern.permute.xlu0 0
        %657 = vperm.xlu0 %656, %v643
        %v658 = vpop.permute.xlu0 %657
        %661 = vset.pattern.permute.xlu0 0
        %662 = vperm.xlu0 %661, %v644
        %v663 = vpop.permute.xlu0 %662
        %vm665 = vcmask 64512
        %v667 = vsel %vm665, %v637, 0
        %v670 = vsel %vm665, %v638, 0
        %v673 = vsel %vm665, %v639, 0
        %v676 = vsel %vm665, %v640, 0
        %678 = vmatpush.msra.mxu0 0.0
        %679 = vmatpush.msra.mxu0 0.0
        %680 = vmatpush.msra.mxu0 0.0
        %681 = vmatpush.msra.mxu0 0.0
        %682 = vmatpush.msra.mxu0 0.0
        %683 = vmatpush.msra.mxu0 0.0
        %684 = vmatpush.msra.mxu0 0.0
        %685 = vmatpush.msra.mxu0 0.0
        %686 = vmatpush.msra.mxu0 0.0
        %687 = vmatpush.msra.mxu0 0.0
        %688 = vmatpush.msra.mxu0 0.0
        %689 = vmatpush.msra.mxu0 0.0
        %690 = vmatpush.msra.mxu0 0.0
        %691 = vmatpush.msra.mxu0 0.0
        %692 = vmatpush.msra.mxu0 0.0
        %v693 = vand.u32 %v636, 4294901760
        %694 = vmatpush.msra.mxu0 %v693
        %v695 = vand.u32 %v667, 4294901760
        %v696 = vsub.f32 %v667, %v695
        %v697 = vand.u32 %v696, 4294901760
        %v698 = vsub.f32 %v696, %v697
        %v699 = vand.u32 %v698, 4294901760
        %700 = vmatmul.f32.gmra.mxu0 %v699
        %v701 = vpop.f32.mrf.mxu0
        %v702 = vadd.f32 %v648, %v701
        %v703 = vand.u32 %v670, 4294901760
        %v704 = vsub.f32 %v670, %v703
        %v705 = vand.u32 %v704, 4294901760
        %v706 = vsub.f32 %v704, %v705
        %v707 = vand.u32 %v706, 4294901760
        %708 = vmatmul.f32.gmra.mxu0 %v707
        %v709 = vpop.f32.mrf.mxu0
        %v710 = vadd.f32 %v653, %v709
        %v711 = vand.u32 %v673, 4294901760
        %v712 = vsub.f32 %v673, %v711
        %v713 = vand.u32 %v712, 4294901760
        %v714 = vsub.f32 %v712, %v713
        %v715 = vand.u32 %v714, 4294901760
        %716 = vmatmul.f32.gmra.mxu0 %v715
        %v717 = vpop.f32.mrf.mxu0
        %v718 = vadd.f32 %v658, %v717
        %v719 = vand.u32 %v676, 4294901760
        %v720 = vsub.f32 %v676, %v719
        %v721 = vand.u32 %v720, 4294901760
        %v722 = vsub.f32 %v720, %v721
        %v723 = vand.u32 %v722, 4294901760
        %724 = vmatmul.f32.gmra.mxu0 %v723
        %v725 = vpop.f32.mrf.mxu0
        %v726 = vadd.f32 %v663, %v725
        %727 = vdwg.mxu0
        %728 = vmatpush.msra.mxu0 0.0
        %729 = vmatpush.msra.mxu0 0.0
        %730 = vmatpush.msra.mxu0 0.0
        %731 = vmatpush.msra.mxu0 0.0
        %732 = vmatpush.msra.mxu0 0.0
        %733 = vmatpush.msra.mxu0 0.0
        %734 = vmatpush.msra.mxu0 0.0
        %735 = vmatpush.msra.mxu0 0.0
        %736 = vmatpush.msra.mxu0 0.0
        %737 = vmatpush.msra.mxu0 0.0
        %738 = vmatpush.msra.mxu0 0.0
        %739 = vmatpush.msra.mxu0 0.0
        %740 = vmatpush.msra.mxu0 0.0
        %741 = vmatpush.msra.mxu0 0.0
        %742 = vmatpush.msra.mxu0 0.0
        %v743 = vand.u32 %v636, 4294901760
        %v744 = vsub.f32 %v636, %v743
        %v745 = vand.u32 %v744, 4294901760
        %v746 = vsub.f32 %v744, %v745
        %v747 = vand.u32 %v746, 4294901760
        %748 = vmatpush.msra.mxu0 %v747
        %v749 = vand.u32 %v667, 4294901760
        %750 = vmatmul.f32.gmra.mxu0 %v749
        %v751 = vpop.f32.mrf.mxu0
        %v752 = vadd.f32 %v702, %v751
        %v753 = vand.u32 %v670, 4294901760
        %754 = vmatmul.f32.gmra.mxu0 %v753
        %v755 = vpop.f32.mrf.mxu0
        %v756 = vadd.f32 %v710, %v755
        %v757 = vand.u32 %v673, 4294901760
        %758 = vmatmul.f32.gmra.mxu0 %v757
        %v759 = vpop.f32.mrf.mxu0
        %v760 = vadd.f32 %v718, %v759
        %v761 = vand.u32 %v676, 4294901760
        %762 = vmatmul.f32.gmra.mxu0 %v761
        %v763 = vpop.f32.mrf.mxu0
        %v764 = vadd.f32 %v726, %v763
        %765 = vdwg.mxu0
        %766 = vmatpush.msra.mxu0 0.0
        %767 = vmatpush.msra.mxu0 0.0
        %768 = vmatpush.msra.mxu0 0.0
        %769 = vmatpush.msra.mxu0 0.0
        %770 = vmatpush.msra.mxu0 0.0
        %771 = vmatpush.msra.mxu0 0.0
        %772 = vmatpush.msra.mxu0 0.0
        %773 = vmatpush.msra.mxu0 0.0
        %774 = vmatpush.msra.mxu0 0.0
        %775 = vmatpush.msra.mxu0 0.0
        %776 = vmatpush.msra.mxu0 0.0
        %777 = vmatpush.msra.mxu0 0.0
        %778 = vmatpush.msra.mxu0 0.0
        %779 = vmatpush.msra.mxu0 0.0
        %780 = vmatpush.msra.mxu0 0.0
        %v781 = vand.u32 %v636, 4294901760
        %v782 = vsub.f32 %v636, %v781
        %783 = vmatpush.msra.mxu0 %v782
        %v784 = vand.u32 %v667, 4294901760
        %v785 = vsub.f32 %v667, %v784
        %786 = vmatmul.f32.gmra.mxu0 %v785
        %v787 = vpop.f32.mrf.mxu0
        %v788 = vadd.f32 %v752, %v787
        %v789 = vand.u32 %v670, 4294901760
        %v790 = vsub.f32 %v670, %v789
        %791 = vmatmul.f32.gmra.mxu0 %v790
        %v792 = vpop.f32.mrf.mxu0
        %v793 = vadd.f32 %v756, %v792
        %v794 = vand.u32 %v673, 4294901760
        %v795 = vsub.f32 %v673, %v794
        %796 = vmatmul.f32.gmra.mxu0 %v795
        %v797 = vpop.f32.mrf.mxu0
        %v798 = vadd.f32 %v760, %v797
        %v799 = vand.u32 %v676, 4294901760
        %v800 = vsub.f32 %v676, %v799
        %801 = vmatmul.f32.gmra.mxu0 %v800
        %v802 = vpop.f32.mrf.mxu0
        %v803 = vadd.f32 %v764, %v802
        %804 = vdwg.mxu0
        %805 = vmatpush.msra.mxu0 0.0
        %806 = vmatpush.msra.mxu0 0.0
        %807 = vmatpush.msra.mxu0 0.0
        %808 = vmatpush.msra.mxu0 0.0
        %809 = vmatpush.msra.mxu0 0.0
        %810 = vmatpush.msra.mxu0 0.0
        %811 = vmatpush.msra.mxu0 0.0
        %812 = vmatpush.msra.mxu0 0.0
        %813 = vmatpush.msra.mxu0 0.0
        %814 = vmatpush.msra.mxu0 0.0
        %815 = vmatpush.msra.mxu0 0.0
        %816 = vmatpush.msra.mxu0 0.0
        %817 = vmatpush.msra.mxu0 0.0
        %818 = vmatpush.msra.mxu0 0.0
        %819 = vmatpush.msra.mxu0 0.0
        %v820 = vand.u32 %v636, 4294901760
        %821 = vmatpush.msra.mxu0 %v820
        %v822 = vand.u32 %v667, 4294901760
        %v823 = vsub.f32 %v667, %v822
        %v824 = vand.u32 %v823, 4294901760
        %825 = vmatmul.f32.gmra.mxu0 %v824
        %v826 = vpop.f32.mrf.mxu0
        %v827 = vadd.f32 %v788, %v826
        %v828 = vand.u32 %v670, 4294901760
        %v829 = vsub.f32 %v670, %v828
        %v830 = vand.u32 %v829, 4294901760
        %831 = vmatmul.f32.gmra.mxu0 %v830
        %v832 = vpop.f32.mrf.mxu0
        %v833 = vadd.f32 %v793, %v832
        %v834 = vand.u32 %v673, 4294901760
        %v835 = vsub.f32 %v673, %v834
        %v836 = vand.u32 %v835, 4294901760
        %837 = vmatmul.f32.gmra.mxu0 %v836
        %v838 = vpop.f32.mrf.mxu0
        %v839 = vadd.f32 %v798, %v838
        %v840 = vand.u32 %v676, 4294901760
        %v841 = vsub.f32 %v676, %v840
        %v842 = vand.u32 %v841, 4294901760
        %843 = vmatmul.f32.gmra.mxu0 %v842
        %v844 = vpop.f32.mrf.mxu0
        %v845 = vadd.f32 %v803, %v844
        %846 = vdwg.mxu0
        %847 = vmatpush.msra.mxu0 0.0
        %848 = vmatpush.msra.mxu0 0.0
        %849 = vmatpush.msra.mxu0 0.0
        %850 = vmatpush.msra.mxu0 0.0
        %851 = vmatpush.msra.mxu0 0.0
        %852 = vmatpush.msra.mxu0 0.0
        %853 = vmatpush.msra.mxu0 0.0
        %854 = vmatpush.msra.mxu0 0.0
        %855 = vmatpush.msra.mxu0 0.0
        %856 = vmatpush.msra.mxu0 0.0
        %857 = vmatpush.msra.mxu0 0.0
        %858 = vmatpush.msra.mxu0 0.0
        %859 = vmatpush.msra.mxu0 0.0
        %860 = vmatpush.msra.mxu0 0.0
        %861 = vmatpush.msra.mxu0 0.0
        %v862 = vand.u32 %v636, 4294901760
        %v863 = vsub.f32 %v636, %v862
        %v864 = vand.u32 %v863, 4294901760
        %865 = vmatpush.msra.mxu0 %v864
        %v866 = vand.u32 %v667, 4294901760
        %867 = vmatmul.f32.gmra.mxu0 %v866
        %v868 = vpop.f32.mrf.mxu0
        %v869 = vadd.f32 %v827, %v868
        %v870 = vand.u32 %v670, 4294901760
        %871 = vmatmul.f32.gmra.mxu0 %v870
        %v872 = vpop.f32.mrf.mxu0
        %v873 = vadd.f32 %v833, %v872
        %v874 = vand.u32 %v673, 4294901760
        %875 = vmatmul.f32.gmra.mxu0 %v874
        %v876 = vpop.f32.mrf.mxu0
        %v877 = vadd.f32 %v839, %v876
        %v878 = vand.u32 %v676, 4294901760
        %879 = vmatmul.f32.gmra.mxu0 %v878
        %v880 = vpop.f32.mrf.mxu0
        %v881 = vadd.f32 %v845, %v880
        %882 = vdwg.mxu0
        %883 = vmatpush.msra.mxu0 0.0
        %884 = vmatpush.msra.mxu0 0.0
        %885 = vmatpush.msra.mxu0 0.0
        %886 = vmatpush.msra.mxu0 0.0
        %887 = vmatpush.msra.mxu0 0.0
        %888 = vmatpush.msra.mxu0 0.0
        %889 = vmatpush.msra.mxu0 0.0
        %890 = vmatpush.msra.mxu0 0.0
        %891 = vmatpush.msra.mxu0 0.0
        %892 = vmatpush.msra.mxu0 0.0
        %893 = vmatpush.msra.mxu0 0.0
        %894 = vmatpush.msra.mxu0 0.0
        %895 = vmatpush.msra.mxu0 0.0
        %896 = vmatpush.msra.mxu0 0.0
        %897 = vmatpush.msra.mxu0 0.0
        %v898 = vand.u32 %v636, 4294901760
        %899 = vmatpush.msra.mxu0 %v898
        %v900 = vand.u32 %v667, 4294901760
        %901 = vmatmul.f32.gmra.mxu0 %v900
        %v902 = vpop.f32.mrf.mxu0
        %v903 = vadd.f32 %v869, %v902
        %v904 = vand.u32 %v670, 4294901760
        %905 = vmatmul.f32.gmra.mxu0 %v904
        %v906 = vpop.f32.mrf.mxu0
        %v907 = vadd.f32 %v873, %v906
        %v908 = vand.u32 %v673, 4294901760
        %909 = vmatmul.f32.gmra.mxu0 %v908
        %v910 = vpop.f32.mrf.mxu0
        %v911 = vadd.f32 %v877, %v910
        %v912 = vand.u32 %v676, 4294901760
        %913 = vmatmul.f32.gmra.mxu0 %v912
        %v914 = vpop.f32.mrf.mxu0
        %v915 = vadd.f32 %v881, %v914
        %916 = vdwg.mxu0
        %917 = vst [vmem:[%s248] sm:$0xff] %v903
        %918 = vst [vmem:[%s248 + $0x8] sm:$0xff] %v907
        %919 = vst [vmem:[%s248 + $0x10] sm:$0xff] %v911
        %920 = vst [vmem:[%s248 + $0x18] sm:$0xff] %v915
        %s921 = sand.u32 %s143, 1
        %s922 = scalar_lea.sflag [#allocation4], %s921
        %s923 = sand.u32 %s143, 1
        %s924 = smul.addr %s923, 32
        %s925 = scalar_lea.vmem [#allocation6], %s924
        // Predicated region
        $region45: #{tpu_custom_call.1} parent=39 // pred_check
          %p926 = pneg %p153
        $region46: #{tpu_custom_call.1} parent=39 // pred_check_branch
          %928 = sbr.rel (%p926) target = $region48
        $region47: #{tpu_custom_call.1} parent=39 // pred_region
          %930 = vsyncadd %s922, 0
          %s931 = smul.addr %s20, 8
          %s932 = scalar_lea.hbm %s5, %s931
          %s933 = sshll.u32 %s925, 4
          %s934 = int_to_ptr.vmem [resolvable:$true] %s933
          %s935 = sshll.u32 %s932, 4
          %s936 = int_to_ptr.hbm [resolvable:$true] %s935
          %941 = dma.vmem_to_hbm [thread:$0]  %s934, 512, %s936, %s922, 128, 256, 8
        $region48: #{tpu_custom_call.1} parent=39 // pred_fallthru
          _
      $region40: #{tpu_custom_call.1} parent=5 // pred_fallthru
        _
      %p942 = scmp.le.s32.totalorder 2, %s15
      // Predicated region
      $region49: #{tpu_custom_call.1} parent=5 // pred_check
        %p943 = pneg %p942
      $region50: #{tpu_custom_call.1} parent=5 // pred_check_branch
        %945 = sbr.rel (%p943) target = $region52
      $region51: #{tpu_custom_call.1} parent=5 // pred_region
        %s946 = ssub.s32 %s15, 2
        // Predicated region
        $region53: #{tpu_custom_call.1} parent=51 // pred_check
          %p947 = pneg %p159
        $region54: #{tpu_custom_call.1} parent=51 // pred_check_branch
          %949 = sbr.rel (%p947) target = $region56
        $region55: #{tpu_custom_call.1} parent=51 // pred_region
          %s950 = sand.u32 %s144, 1
          %s951 = scalar_lea.sflag [#allocation4], %s950
          %s952 = sand.u32 %s144, 1
          %s953 = smul.addr %s952, 32
          %s954 = scalar_lea.vmem [#allocation6], %s953
          %956 = dma.done %s951, 512
        $region56: #{tpu_custom_call.1} parent=51 // pred_fallthru
          _
      $region52: #{tpu_custom_call.1} parent=5 // pred_fallthru
        _
    $region6: #{tpu_custom_call.1} parent=1 // loop_footer
      %s19 = sadd.s32 1, %s15
    $region7: #{tpu_custom_call.1} parent=1 // loop_footer_branch
      %14 = sbr.rel target = $region3
    $region8: #{tpu_custom_call.1} parent=1 // loop_exit
      _
    %957 = vsyncpa [#allocation4], 1
    %s958 = scalar_lea.sflag [#allocation4], 1
    %959 = vsyncpa %s958, 1
    %960 = vsyncpa [#allocation5], 1
    %s961 = scalar_lea.sflag [#allocation5], 1
    %962 = vsyncpa %s961, 1

</llo_original>
